<compile_context>
chip_gen: v6e
topology: v6e:2x2x1
jax: 0.10.0
libtpu: 0.0.40
codegen_flags: <defaults>
</compile_context>

<pallas_src>
import jax
import jax.numpy as jnp
from jax.experimental import pallas as pl
from jax.experimental.pallas import tpu as pltpu

_LANE = 128
_SUBLANE = 8
_F32_LOWEST = float(jnp.finfo(jnp.float32).min)


def _round_up(x: int, m: int) -> int:
    return ((x + m - 1) // m) * m


# ----------------------------- hardware queries ------------------------------

def _tpu_info():
    try:
        return pltpu.get_tpu_info()
    except Exception:
        return None


def _vmem_capacity_bytes() -> int:
    info = _tpu_info()
    if info is not None:
        for attr in ("vmem_capacity_bytes", "vmem_bytes"):
            v = getattr(info, attr, None)
            if v:
                try:
                    return int(v)
                except Exception:
                    pass
    return 64 * 1024 * 1024  # conservative fallback (v7x per-core VMEM)


def _device_kind() -> str:
    try:
        return jax.devices()[0].device_kind.lower()
    except Exception:
        return ""


def _num_tensorcores() -> int:
    info = _tpu_info()
    for attr in ("num_cores", "tensorcore_count", "core_count", "cores_per_chip"):
        v = getattr(info, attr, None) if info is not None else None
        if v:
            try:
                return max(1, int(v))
            except Exception:
                pass
    kind = _device_kind()
    # Dual-TensorCore parts (v4 / v5p / v7x); v5e and v6e are single-TC.
    if any(t in kind for t in ("v4", "v5p", "7")):
        return 2
    return 1


def _supports_bf16_vector() -> bool:
    # bf16 VPU/EUP exists on v6e and newer; keep f32 compute on v5e and older.
    kind = _device_kind()
    return any(t in kind for t in ("v6", "7"))


def _compute_dtype(in_dtype):
    if jnp.dtype(in_dtype) == jnp.dtype(jnp.bfloat16) and _supports_bf16_vector():
        return jnp.dtype(jnp.bfloat16)
    return jnp.dtype(jnp.float32)


# ------------------------------- tile sizing ---------------------------------

def _choose_col_tile(d: int, bytes_per_col: int, budget_bytes: int,
                     num_cores: int) -> int:
    """Column tile width (multiple of 128 lanes) sized by bytes.

    On multi-TensorCore chips prefer an even number (>=2) of grid steps along
    the parallel column axis so the megacore split is balanced; on single-TC
    chips just take the largest tile that fits the budget.
    """
    d_ceil = _round_up(max(d, 1), _LANE)
    max_lanes = max(_LANE, ((budget_bytes // max(bytes_per_col, 1)) // _LANE) * _LANE)
    tn = min(d_ceil, max_lanes)
    if num_cores >= 2 and d_ceil >= 2 * _LANE:
        steps = 2
        while steps * _LANE <= d_ceil:
            cand = _round_up(pl.cdiv(d_ceil, steps), _LANE)
            if cand <= max_lanes and pl.cdiv(d_ceil, cand) % 2 == 0:
                return cand
            steps += 2
        # No balanced split within budget: at least keep >= 2 steps.
        if pl.cdiv(d_ceil, tn) < 2:
            tn = max(_LANE, _round_up(pl.cdiv(d_ceil, 2), _LANE))
    return tn


# --------------------------- one-pass kernel ---------------------------------

def _make_onepass_kernel(compute_dtype, approx_recip):
    def kernel(x_ref, o_ref):
        x = x_ref[...].astype(compute_dtype)
        x_max = jnp.max(x, axis=0, keepdims=True)            # exact in any float dtype
        x_exp = jnp.exp(x - x_max)
        partition = jnp.sum(x_exp.astype(jnp.float32), axis=0, keepdims=True)
        if approx_recip:
            inv = pl.reciprocal(partition, approx=True)       # EUP slot
        else:
            inv = 1.0 / partition                             # exact for f32 outputs
        o_ref[...] = (x_exp * inv.astype(compute_dtype)).astype(o_ref.dtype)
    return kernel


# --------------------------- two-pass kernels ---------------------------------

def _make_stats_kernel(n_rows: int, tr: int):
    needs_row_mask = (n_rows % tr) != 0

    def kernel(x_ref, max_ref, sum_ref):
        r = pl.program_id(1)

        @pl.when(r == 0)
        def _():
            # Finite lowest (not -inf) so exp(m_prev - m_new) can never be NaN.
            max_ref[...] = jnp.full(max_ref.shape, _F32_LOWEST, dtype=max_ref.dtype)
            sum_ref[...] = jnp.zeros(sum_ref.shape, dtype=sum_ref.dtype)

        xf = x_ref[...].astype(jnp.float32)
        if needs_row_mask:
            rows = r * tr + jax.lax.broadcasted_iota(jnp.int32, xf.shape, 0)
            valid = rows < n_rows
            col_max = jnp.max(jnp.where(valid, xf, -jnp.inf), axis=0, keepdims=True)
        else:
            col_max = jnp.max(xf, axis=0, keepdims=True)

        m_prev = max_ref[...]
        m_new = jnp.maximum(m_prev, col_max)
        e = jnp.exp(xf - m_new)
        if needs_row_mask:
            e = jnp.where(valid, e, 0.0)
        sum_ref[...] = (sum_ref[...] * jnp.exp(m_prev - m_new)
                        + jnp.sum(e, axis=0, keepdims=True))
        max_ref[...] = m_new

    return kernel


def _make_apply_kernel(compute_dtype, approx_recip):
    def kernel(x_ref, max_ref, sum_ref, o_ref):
        x = x_ref[...].astype(compute_dtype)
        m = max_ref[...].astype(compute_dtype)
        p = sum_ref[...]
        if approx_recip:
            inv = pl.reciprocal(p, approx=True)
        else:
            inv = 1.0 / p
        o_ref[...] = (jnp.exp(x - m) * inv.astype(compute_dtype)).astype(o_ref.dtype)
    return kernel


# ------------------------------- wrapper --------------------------------------

def softmax_stable(x: jax.Array, *, force_two_pass: bool = False) -> jax.Array:
    """Stable softmax over dim 0, matching SoftmaxStable.forward."""
    orig_shape = x.shape
    if x.ndim == 1:
        x2 = x.reshape(x.shape[0], 1)
    elif x.ndim == 2:
        x2 = x
    else:
        # softmax over dim 0 is independent per trailing index -> flatten them.
        x2 = x.reshape(x.shape[0], -1)

    n, d = x2.shape
    in_dtype = x2.dtype
    out_dtype = in_dtype
    in_b = jnp.dtype(in_dtype).itemsize
    out_b = jnp.dtype(out_dtype).itemsize

    compute_dtype = _compute_dtype(in_dtype)
    cd_b = jnp.dtype(compute_dtype).itemsize
    approx_recip = jnp.dtype(out_dtype).itemsize < 4

    n_cores = _num_tensorcores()
    vmem_cap = _vmem_capacity_bytes()
    tile_budget = int(0.45 * vmem_cap)                     # per-step tile footprint
    vmem_limit = max(32 * 1024 * 1024, int(0.75 * vmem_cap))

    # Per-element working set: x + exp(x - max) in compute dtype, plus an f32
    # widen for the column sum when computing in bf16.  Inputs/outputs are
    # double-buffered by the pipeline.
    work_b = 2 * cd_b + (4 if cd_b < 4 else 0)
    bytes_per_col_1p = n * (2 * in_b + 2 * out_b + work_b) + 64

    d_ceil = _round_up(max(d, 1), _LANE)
    use_onepass = (_LANE * bytes_per_col_1p <= tile_budget) and not force_two_pass

    if use_onepass:
        fits_whole = d_ceil * bytes_per_col_1p <= tile_budget
        if fits_whole and (n_cores == 1 or d_ceil < 2 * _LANE):
            tn = d  # full-extent block: no partial column tiles at all
        else:
            tn = _choose_col_tile(d, bytes_per_col_1p, tile_budget, n_cores)
        grid = (pl.cdiv(d, tn),)

        out = pl.pallas_call(
            _make_onepass_kernel(compute_dtype, approx_recip),
            out_shape=jax.ShapeDtypeStruct((n, d), out_dtype),
            grid_spec=pltpu.PrefetchScalarGridSpec(
                num_scalar_prefetch=0,
                grid=grid,
                in_specs=[pl.BlockSpec((n, tn), lambda j: (0, j))],
                out_specs=pl.BlockSpec((n, tn), lambda j: (0, j)),
            ),
            compiler_params=pltpu.CompilerParams(
                dimension_semantics=("parallel",),
                vmem_limit_bytes=vmem_limit),
            cost_estimate=pl.CostEstimate(
                flops=int(4 * n * d),
                transcendentals=int(n * d),
                bytes_accessed=int((in_b + out_b) * n * d)),
        )(x2)
        return out.reshape(orig_shape)

    # --------- two-pass (online stats) path: N too large for full residency ---------
    per_elem = 2 * in_b + 2 * out_b + work_b
    tn = _choose_col_tile(d, 512 * per_elem, tile_budget, n_cores)
    tr_max = max(_SUBLANE, ((tile_budget // max(tn * per_elem, 1)) // _SUBLANE) * _SUBLANE)
    tr = min(_round_up(n, _SUBLANE), tr_max)

    grid = (pl.cdiv(d, tn), pl.cdiv(n, tr))
    x_spec = pl.BlockSpec((tr, tn), lambda j, r: (r, j))
    stat_spec = pl.BlockSpec((1, tn), lambda j, r: (0, j))

    col_max, col_sum = pl.pallas_call(
        _make_stats_kernel(n, tr),
        out_shape=(jax.ShapeDtypeStruct((1, d), jnp.float32),
                   jax.ShapeDtypeStruct((1, d), jnp.float32)),
        grid_spec=pltpu.PrefetchScalarGridSpec(
            num_scalar_prefetch=0,
            grid=grid,
            in_specs=[x_spec],
            out_specs=(stat_spec, stat_spec),
        ),
        compiler_params=pltpu.CompilerParams(
            dimension_semantics=("parallel", "arbitrary"),
            vmem_limit_bytes=vmem_limit),
        cost_estimate=pl.CostEstimate(
            flops=int(2 * n * d),
            transcendentals=int(n * d),
            bytes_accessed=int(in_b * n * d + 8 * d)),
    )(x2)

    out = pl.pallas_call(
        _make_apply_kernel(compute_dtype, approx_recip),
        out_shape=jax.ShapeDtypeStruct((n, d), out_dtype),
        grid_spec=pltpu.PrefetchScalarGridSpec(
            num_scalar_prefetch=0,
            grid=grid,
            in_specs=[x_spec, stat_spec, stat_spec],
            out_specs=pl.BlockSpec((tr, tn), lambda j, r: (r, j)),
        ),
        compiler_params=pltpu.CompilerParams(
            dimension_semantics=("parallel", "parallel"),
            vmem_limit_bytes=vmem_limit),
        cost_estimate=pl.CostEstimate(
            flops=int(3 * n * d),
            transcendentals=int(n * d),
            bytes_accessed=int((in_b + out_b) * n * d + 8 * d)),
    )(x2, col_max, col_sum)

    return out.reshape(orig_shape)


def _ref_softmax0(x):
    x_max = jnp.max(x, axis=0, keepdims=True)
    x_exp = jnp.exp(x - x_max)
    return x_exp / jnp.sum(x_exp, axis=0, keepdims=True)


if __name__ == "__main__":
    key = jax.random.PRNGKey(0)

    # Small shape consistent with the module's forward: seq=8, hidden=32.
    x = jax.random.normal(key, (8, 32), dtype=jnp.float32)
    out = jax.block_until_ready(softmax_stable(x))
    ref = _ref_softmax0(x)
    assert out.shape == x.shape and out.dtype == x.dtype
    assert jnp.allclose(out, ref, atol=1e-6, rtol=1e-5)
    assert jnp.allclose(jnp.sum(out, axis=0), jnp.ones((32,)), atol=1e-5)

    # Non-128-aligned D: exercises ragged lanes with no wrapper pad/slice.
    x_w = jax.random.normal(jax.random.PRNGKey(1), (64, 1000), dtype=jnp.float32)
    out_w = jax.block_until_ready(softmax_stable(x_w))
    assert jnp.allclose(out_w, _ref_softmax0(x_w), atol=1e-6, rtol=1e-5)

    # Forced two-pass (online stats): exercises row tiling + in-kernel row mask.
    x_t = jax.random.normal(jax.random.PRNGKey(2), (13, 200), dtype=jnp.float32)
    out_t = jax.block_until_ready(softmax_stable(x_t, force_two_pass=True))
    assert jnp.allclose(out_t, _ref_softmax0(x_t), atol=1e-6, rtol=1e-5)

    # bf16 input: bf16 compute on v6e/v7x, f32 compute on v5e.
    x_b = jax.random.normal(jax.random.PRNGKey(3), (16, 256), dtype=jnp.bfloat16)
    out_b = jax.block_until_ready(softmax_stable(x_b))
    assert out_b.dtype == jnp.bfloat16
    assert jnp.allclose(out_b.astype(jnp.float32),
                        _ref_softmax0(x_b.astype(jnp.float32)), atol=3e-2)

    print("KERNEL_OK")
</pallas_src>

<mosaic_0001>
module attributes {stable_mosaic.version = 11 : i64} {
  func.func @kernel(%arg0: i32, %arg1: memref<8x32xf32, #tpu.memory_space<vmem>>, %arg2: memref<8x32xf32, #tpu.memory_space<vmem>>) attributes {dimension_semantics = [#tpu.dimension_semantics<parallel>], iteration_bounds = array<i64: 1>, scalar_prefetch = 0 : i64, scratch_operands = 0 : i64, tpu.core_type = #tpu.core_type<tc>, window_params = [{transform_indices = @transform_0, window_bounds = array<i64: 8, 32>}, {transform_indices = @transform_1, window_bounds = array<i64: 8, 32>}]} {
    %c0 = arith.constant 0 : index
    %c0_0 = arith.constant 0 : index
    %0 = vector.load %arg1[%c0, %c0_0] : memref<8x32xf32, #tpu.memory_space<vmem>>, vector<8x32xf32>
    %cst = arith.constant dense<0xFF800000> : vector<32xf32>
    %1 = vector.multi_reduction <maximumf>, %0, %cst [0] : vector<8x32xf32> to vector<32xf32>
    %2 = vector.shape_cast %1 : vector<32xf32> to vector<1x32xf32>
    %3 = vector.broadcast %2 : vector<1x32xf32> to vector<8x32xf32>
    %4 = arith.subf %0, %3 : vector<8x32xf32>
    %5 = math.exp %4 : vector<8x32xf32>
    %cst_1 = arith.constant dense<0.000000e+00> : vector<32xf32>
    %6 = vector.multi_reduction <add>, %5, %cst_1 [0] : vector<8x32xf32> to vector<32xf32>
    %7 = vector.shape_cast %6 : vector<32xf32> to vector<1x32xf32>
    %cst_2 = arith.constant 1.000000e+00 : f32
    %8 = vector.broadcast %cst_2 : f32 to vector<1x32xf32>
    %9 = arith.divf %8, %7 : vector<1x32xf32>
    %10 = vector.broadcast %9 : vector<1x32xf32> to vector<8x32xf32>
    %11 = arith.mulf %5, %10 : vector<8x32xf32>
    %c0_3 = arith.constant 0 : index
    %c0_4 = arith.constant 0 : index
    %12 = vector.load %arg2[%c0_3, %c0_4] : memref<8x32xf32, #tpu.memory_space<vmem>>, vector<8x32xf32>
    tpu.vector_store %arg2[%c0_3, %c0_4], %11 {strides = array<i32>} : memref<8x32xf32, #tpu.memory_space<vmem>>, vector<8x32xf32>,
    return
  }
  func.func @transform_0(%arg0: i32) -> (i32, i32) {
    %c0_i32 = arith.constant 0 : i32
    %c0_i32_0 = arith.constant 0 : i32
    return %c0_i32, %arg0 : i32, i32
  }
  func.func @transform_1(%arg0: i32) -> (i32, i32) {
    %c0_i32 = arith.constant 0 : i32
    %c0_i32_0 = arith.constant 0 : i32
    return %c0_i32, %arg0 : i32, i32
  }
}

</mosaic_0001>

<llo_original>
// kernel: tpu_custom_call.1
$region0: #{tpu_custom_call.1}
  #allocation0 [shape = 'u32[]', space=smem, size = 0x4, offset = 0x4, fixed_abs, tag = 'smem constant byte address 0x4 - core index']
  #allocation1 [shape = 'u32[144,128]{1,0:T(1,128)}', space=vmem, size = 0x12000, scoped, tag = 'internal scratch']
  %s0 = inlined_call_operand.hbm [shape: f32[8,32], index: 0, kind: input, shape index: {}]
  %s1 = inlined_call_operand.hbm [shape: f32[8,32], index: 1, kind: output, shape index: {}]
  %s2 = sld [smem:[#allocation0]]
  $region18: #{tpu_custom_call.1} parent=0
    _
  %s4 = ssub.s32 1, %s2
  %s5 = scalar_select 0, %s4, %s2
  $region1: #{tpu_custom_call.1} parent=0
    #allocation2 [shape = 'u8[4096]{0}', space=vmem, size = 0x1000, scoped, tag = 'input window, operand 0, single buffered']
    #allocation3 [shape = 's32[1]{0}', space=sflag, size = 0x4, scoped, tag = 'scoped memory for tpu_custom_call.1']
    #allocation4 [shape = 's32[1]{0}', space=sflag, size = 0x4, scoped, tag = 'scoped memory for tpu_custom_call.1']
    #allocation5 [shape = 'u8[4096]{0}', space=vmem, size = 0x1000, scoped, tag = 'output window, operand 0, single buffered']
    %6 = vsyncpa [#allocation3], 0
    %7 = vsyncpa [#allocation4], 0
    // Predicated region
    $region2: #{tpu_custom_call.1} parent=1 // pred_check
      _
    $region3: #{tpu_custom_call.1} parent=1 // pred_check_branch
      %9 = sbr.rel (0) target = $region5
    $region4: #{tpu_custom_call.1} parent=1 // pred_region
      %s11 = ssub.s32 128, 128
      %12 = vsyncadd [#allocation3], %s11
      %s14 = sshll.u32 [#allocation2], 4
      %s15 = int_to_ptr.vmem [resolvable:$true] %s14
      %17 = dma.hbm_to_vmem [thread:$0]  %s0, 128, %s15, [#allocation3]
    $region5: #{tpu_custom_call.1} parent=1 // pred_fallthru
      _
    // Predicated region
    $region6: #{tpu_custom_call.1} parent=1 // pred_check
      _
    $region7: #{tpu_custom_call.1} parent=1 // pred_check_branch
      %19 = sbr.rel (0) target = $region9
    $region8: #{tpu_custom_call.1} parent=1 // pred_region
      %20 = dma.done [#allocation3], 128
    $region9: #{tpu_custom_call.1} parent=1 // pred_fallthru
      _
    %v21 = vld [vmem:[#allocation2] sm:$0xff]
    %vm22 = vcmask 261120
    %v23 = vsel %vm22, %v21, -inf
    %v24 = vrot.slane %v23, 4
    %v25 = vmax.f32 %v23, %v24
    %v26 = vrot.slane %v25, 2
    %v27 = vmax.f32 %v25, %v26
    %v28 = vrot.slane %v27, 1
    %v29 = vmax.f32 %v27, %v28
    %v30 = vsub.f32 %v21, %v29
    %v31 = vmul.f32 %v30, 1.442695
    %v32 = vpow.pop %v31
    %v33 = vsel %vm22, %v32, 0.0
    %v34 = vrot.slane %v33, 4
    %v35 = vadd.f32 %v33, %v34
    %v36 = vrot.slane %v35, 2
    %v37 = vadd.f32 %v35, %v36
    %v38 = vrot.slane %v37, 1
    %v39 = vadd.f32 %v37, %v38
    %v40 = vrcp.pop %v39
    %v41 = vmul.f32 1.0, %v40
    %v42 = vmul.f32 %v32, %v41
    %43 = vst.msk [vmem:[#allocation5] sm:$0xff] %vm22, %v42
    // Predicated region
    $region10: #{tpu_custom_call.1} parent=1 // pred_check
      _
    $region11: #{tpu_custom_call.1} parent=1 // pred_check_branch
      %45 = sbr.rel (0) target = $region13
    $region12: #{tpu_custom_call.1} parent=1 // pred_region
      %s47 = ssub.s32 128, 128
      %48 = vsyncadd [#allocation4], %s47
      %s50 = sshll.u32 [#allocation5], 4
      %s51 = int_to_ptr.vmem [resolvable:$true] %s50
      %53 = dma.vmem_to_hbm [thread:$0]  %s51, 128, %s1, [#allocation4]
    $region13: #{tpu_custom_call.1} parent=1 // pred_fallthru
      _
    // Predicated region
    $region14: #{tpu_custom_call.1} parent=1 // pred_check
      _
    $region15: #{tpu_custom_call.1} parent=1 // pred_check_branch
      %55 = sbr.rel (0) target = $region17
    $region16: #{tpu_custom_call.1} parent=1 // pred_region
      %56 = dma.done [#allocation4], 128
    $region17: #{tpu_custom_call.1} parent=1 // pred_fallthru
      _
    %57 = vsyncpa [#allocation3], 1
    %58 = vsyncpa [#allocation4], 1

</llo_original>
